<compile_context>
chip_gen: v5e
topology: v5e:2x2
jax: 0.10.0
libtpu: 0.0.40
codegen_flags: <defaults>
</compile_context>

<pallas_src>
import jax
import jax.numpy as jnp
from jax.experimental import pallas as pl
from jax.experimental.pallas import tpu as pltpu

STATES = 10


def count_lstm_kernel(x_ref, params_ref, out_ref):
    # params layout (rows):
    #   [0 : states)          -> W_state fused  (states, 3*states)   (h @ W)
    #   [states]              -> input weight for `search`           (1, 3*states)
    #   [states+1]            -> input weight for x_i                (1, 3*states)
    #   [states+2]            -> combined bias  b_in + b_state       (1, 3*states)
    #   [states+3], cols 0:states   -> readout weight (1, states)
    #   [states+3], col  states     -> readout bias
    three = params_ref.shape[1]
    states = three // 3
    samples, length = x_ref.shape

    params = params_ref[...]                                   # single VMEM load
    w_state = params[0:states, :]                              # (states, 3*states)
    w_search = params[states:states + 1, :]                    # (1, 3*states)
    w_xi = params[states + 1:states + 2, :]                    # (1, 3*states)
    bias = params[states + 2:states + 3, :]                    # (1, 3*states)
    w_ro = params[states + 3:states + 4, 0:states]             # (1, states)
    b_ro = params[states + 3:states + 4, states:states + 1]    # (1, 1)

    x = x_ref[...]                                             # (TS, L)
    search = x[:, 0:1]                                         # (TS, 1)

    # Loop-invariant part of the input-side linear + all biases.
    base = search * w_search + bias                            # (TS, 3*states)

    # Input-side pre-activation for every time step, computed once up front:
    #   pre_in[t] = base + X[:, t] * w_xi           shape (L, TS, 3*states)
    # This removes length-1 broadcast-FMAs from the serial recurrence chain.
    x_t = jnp.transpose(x)                                     # (L, TS), one XLU transpose
    pre_in = base[None, :, :] + x_t[:, :, None] * w_xi[None, :, :]

    h = jnp.zeros((samples, states), jnp.float32)
    # torch starts c as zeros(samples, 1); broadcasting on the first update makes
    # zeros(samples, states) equivalent.
    c = jnp.zeros((samples, states), jnp.float32)

    # `length` is a static trace-time constant (8) -> fully unrolled recurrence,
    # one MXU matmul + one fused sigmoid + 3 VPU ops per step.
    for i in range(1, length):
        pre = pre_in[i] + jnp.dot(h, w_state,
                                  preferred_element_type=jnp.float32)  # (TS, 3*states)
        g = jax.nn.sigmoid(pre)
        gate_i = g[:, 0:states]
        gate_f = g[:, states:2 * states]
        new_c = g[:, 2 * states:3 * states]
        c = gate_f * c + gate_i * new_c
        h = new_c                                              # == sigmoid(same pre)

    readout = jnp.sum(h * w_ro, axis=-1, keepdims=True) + b_ro   # (TS, 1)
    out_ref[...] = c + readout                                   # broadcast (TS, states)


@jax.jit
def count_lstm_forward(x, w_ui, b_ui, w_us, b_us, w_fi, b_fi, w_fs, b_fs,
                       w_ni, b_ni, w_ns, b_ns, w_ro, b_ro):
    samples, length = x.shape
    states = w_us.shape[1]
    three = 3 * states

    # Fuse every parameter into one small array -> a single DMA, no per-tensor
    # dead padding.  Weights are stored pre-transposed as (in_features, out_features).
    w_in_all = jnp.concatenate([w_ui, w_fi, w_ni], axis=1)          # (2, 3*states)
    w_state_all = jnp.concatenate([w_us, w_fs, w_ns], axis=1)       # (states, 3*states)
    b_all = jnp.concatenate([b_ui + b_us, b_fi + b_fs, b_ni + b_ns], axis=1)  # (1, 3s)
    ro_row = jnp.zeros((1, three), jnp.float32)
    ro_row = ro_row.at[:, 0:states].set(w_ro).at[:, states:states + 1].set(b_ro)
    params = jnp.concatenate([w_state_all, w_in_all, b_all, ro_row], axis=0)
    # params: (states + 4, 3*states)

    # 1-D grid over samples; at small batch sizes this is a single grid step.
    ts = samples if samples <= 512 else 512
    grid = (pl.cdiv(samples, ts),)

    return pl.pallas_call(
        count_lstm_kernel,
        out_shape=jax.ShapeDtypeStruct((samples, states), jnp.float32),
        grid_spec=pltpu.PrefetchScalarGridSpec(
            num_scalar_prefetch=0,
            grid=grid,
            in_specs=[
                pl.BlockSpec((ts, length), lambda i: (i, 0)),          # x tile
                pl.BlockSpec((states + 4, three), lambda i: (0, 0)),   # resident params
            ],
            out_specs=pl.BlockSpec((ts, states), lambda i: (i, 0)),
        ),
        compiler_params=pltpu.CompilerParams(
            dimension_semantics=("parallel",)),
    )(x, params)


def count_lstm_reference(x, w_ui, b_ui, w_us, b_us, w_fi, b_fi, w_fs, b_fs,
                         w_ni, b_ni, w_ns, b_ns, w_ro, b_ro):
    """Pure-JAX reference mirroring the PyTorch forward exactly."""
    samples, length = x.shape
    states = w_us.shape[1]
    h = jnp.zeros((samples, states), jnp.float32)
    c = jnp.zeros((samples, 1), jnp.float32)
    search = x[:, 0:1]
    for i in range(1, length):
        xc = jnp.concatenate([search, x[:, i:i + 1]], axis=1)       # (S, 2)
        gi = jax.nn.sigmoid(xc @ w_ui + b_ui + h @ w_us + b_us)
        gf = jax.nn.sigmoid(xc @ w_fi + b_fi + h @ w_fs + b_fs)
        nc = jax.nn.sigmoid(xc @ w_ni + b_ni + h @ w_ns + b_ns)
        c = gf * c + gi * nc
        h = jax.nn.sigmoid(xc @ w_ni + b_ni + h @ w_ns + b_ns)
    return c + (h @ w_ro.T + b_ro)


if __name__ == "__main__":
    samples, length, states = 4, 8, STATES

    key = jax.random.PRNGKey(0)
    keys = jax.random.split(key, 16)

    def lin_params(kw, kb, fan_in, fan_out):
        # PyTorch-Linear-style init: U(-1/sqrt(fan_in), 1/sqrt(fan_in)).
        bound = 1.0 / float(jnp.sqrt(float(fan_in)))
        w = jax.random.uniform(kw, (fan_in, fan_out), jnp.float32, -bound, bound)
        b = jax.random.uniform(kb, (1, fan_out), jnp.float32, -bound, bound)
        return w, b

    w_ui, b_ui = lin_params(keys[0], keys[1], 2, states)
    w_us, b_us = lin_params(keys[2], keys[3], states, states)
    w_fi, b_fi = lin_params(keys[4], keys[5], 2, states)
    w_fs, b_fs = lin_params(keys[6], keys[7], states, states)
    w_ni, b_ni = lin_params(keys[8], keys[9], 2, states)
    w_ns, b_ns = lin_params(keys[10], keys[11], states, states)
    ro_bound = 1.0 / float(jnp.sqrt(float(states)))
    w_ro = jax.random.uniform(keys[12], (1, states), jnp.float32, -ro_bound, ro_bound)
    b_ro = jax.random.uniform(keys[13], (1, 1), jnp.float32, -ro_bound, ro_bound)

    weights = (w_ui, b_ui, w_us, b_us, w_fi, b_fi, w_fs, b_fs,
               w_ni, b_ni, w_ns, b_ns, w_ro, b_ro)

    # Small, module-consistent test shape.
    X = jax.random.normal(keys[14], (samples, length), jnp.float32)
    out = count_lstm_forward(X, *weights)
    jax.block_until_ready(out)
    assert out.shape == (samples, states) and out.dtype == jnp.float32
    ref = count_lstm_reference(X, *weights)
    assert jnp.allclose(out, ref, rtol=5e-3, atol=5e-3), "mismatch vs JAX reference"

    # Larger batch exercising the tiled / multi-step grid path.
    X2 = jax.random.normal(keys[15], (1024, length), jnp.float32)
    out2 = count_lstm_forward(X2, *weights)
    jax.block_until_ready(out2)
    ref2 = count_lstm_reference(X2, *weights)
    assert jnp.allclose(out2, ref2, rtol=5e-3, atol=5e-3), "mismatch vs JAX reference (tiled)"

    print("KERNEL_OK")
</pallas_src>

<mosaic_0001>
module attributes {stable_mosaic.version = 11 : i64} {
  func.func @count_lstm_kernel(%arg0: i32, %arg1: memref<4x8xf32, #tpu.memory_space<vmem>>, %arg2: memref<14x30xf32, #tpu.memory_space<vmem>>, %arg3: memref<4x10xf32, #tpu.memory_space<vmem>>) attributes {dimension_semantics = [#tpu.dimension_semantics<parallel>], iteration_bounds = array<i64: 1>, scalar_prefetch = 0 : i64, scratch_operands = 0 : i64, tpu.core_type = #tpu.core_type<tc>, window_params = [{transform_indices = @transform_0, window_bounds = array<i64: 4, 8>}, {pipeline_mode = #tpu.pipeline_mode<synchronous>, transform_indices = @transform_1, window_bounds = array<i64: 14, 30>}, {transform_indices = @transform_2, window_bounds = array<i64: 4, 10>}]} {
    %c0 = arith.constant 0 : index
    %c0_0 = arith.constant 0 : index
    %0 = vector.load %arg2[%c0, %c0_0] : memref<14x30xf32, #tpu.memory_space<vmem>>, vector<14x30xf32>
    %1 = vector.extract_strided_slice %0 {offsets = [0, 0], sizes = [10, 30], strides = [1, 1]} : vector<14x30xf32> to vector<10x30xf32>
    %2 = vector.extract_strided_slice %0 {offsets = [10, 0], sizes = [1, 30], strides = [1, 1]} : vector<14x30xf32> to vector<1x30xf32>
    %3 = vector.extract_strided_slice %0 {offsets = [11, 0], sizes = [1, 30], strides = [1, 1]} : vector<14x30xf32> to vector<1x30xf32>
    %4 = vector.extract_strided_slice %0 {offsets = [12, 0], sizes = [1, 30], strides = [1, 1]} : vector<14x30xf32> to vector<1x30xf32>
    %5 = vector.extract_strided_slice %0 {offsets = [13, 0], sizes = [1, 10], strides = [1, 1]} : vector<14x30xf32> to vector<1x10xf32>
    %6 = vector.extract_strided_slice %0 {offsets = [13, 10], sizes = [1, 1], strides = [1, 1]} : vector<14x30xf32> to vector<1x1xf32>
    %c0_1 = arith.constant 0 : index
    %c0_2 = arith.constant 0 : index
    %7 = vector.load %arg1[%c0_1, %c0_2] : memref<4x8xf32, #tpu.memory_space<vmem>>, vector<4x8xf32>
    %8 = vector.extract_strided_slice %7 {offsets = [0, 0], sizes = [4, 1], strides = [1, 1]} : vector<4x8xf32> to vector<4x1xf32>
    %9 = vector.broadcast %8 : vector<4x1xf32> to vector<4x30xf32>
    %10 = vector.broadcast %2 : vector<1x30xf32> to vector<4x30xf32>
    %11 = arith.mulf %9, %10 : vector<4x30xf32>
    %12 = vector.broadcast %4 : vector<1x30xf32> to vector<4x30xf32>
    %13 = arith.addf %11, %12 : vector<4x30xf32>
    %14 = tpu.transpose %7, [1, 0] : vector<4x8xf32> -> vector<8x4xf32>
    %15 = vector.shape_cast %13 : vector<4x30xf32> to vector<1x4x30xf32>
    %16 = vector.shape_cast %14 : vector<8x4xf32> to vector<8x4x1xf32>
    %17 = vector.shape_cast %3 : vector<1x30xf32> to vector<1x1x30xf32>
    %18 = vector.broadcast %16 : vector<8x4x1xf32> to vector<8x4x30xf32>
    %19 = vector.broadcast %17 : vector<1x1x30xf32> to vector<8x4x30xf32>
    %20 = arith.mulf %18, %19 : vector<8x4x30xf32>
    %21 = vector.broadcast %15 : vector<1x4x30xf32> to vector<8x4x30xf32>
    %22 = arith.addf %21, %20 : vector<8x4x30xf32>
    %cst = arith.constant 0.000000e+00 : f32
    %23 = vector.broadcast %cst : f32 to vector<4x10xf32>
    %cst_3 = arith.constant 0.000000e+00 : f32
    %24 = vector.broadcast %cst_3 : f32 to vector<4x10xf32>
    %25 = vector.extract_strided_slice %22 {offsets = [1, 0, 0], sizes = [1, 4, 30], strides = [1, 1, 1]} : vector<8x4x30xf32> to vector<1x4x30xf32>
    %26 = vector.shape_cast %25 : vector<1x4x30xf32> to vector<4x30xf32>
    %cst_4 = arith.constant dense<0.000000e+00> : vector<4x30xf32>
    %27 = tpu.matmul %23, %1, %cst_4 {dimension_numbers = #tpu.dot_dimension_numbers<[1], [0], [0], [1], [0, 0, 1, 1], [], []>} : vector<4x10xf32>, vector<10x30xf32>, vector<4x30xf32> -> vector<4x30xf32>
    %28 = arith.addf %26, %27 : vector<4x30xf32>
    %29 = arith.negf %28 : vector<4x30xf32>
    %30 = math.exp %29 : vector<4x30xf32>
    %cst_5 = arith.constant 1.000000e+00 : f32
    %31 = vector.broadcast %cst_5 : f32 to vector<4x30xf32>
    %32 = arith.addf %31, %30 : vector<4x30xf32>
    %33 = arith.divf %31, %32 : vector<4x30xf32>
    %34 = vector.extract_strided_slice %33 {offsets = [0, 0], sizes = [4, 10], strides = [1, 1]} : vector<4x30xf32> to vector<4x10xf32>
    %35 = vector.extract_strided_slice %33 {offsets = [0, 10], sizes = [4, 10], strides = [1, 1]} : vector<4x30xf32> to vector<4x10xf32>
    %36 = vector.extract_strided_slice %33 {offsets = [0, 20], sizes = [4, 10], strides = [1, 1]} : vector<4x30xf32> to vector<4x10xf32>
    %37 = arith.mulf %35, %24 : vector<4x10xf32>
    %38 = arith.mulf %34, %36 : vector<4x10xf32>
    %39 = arith.addf %37, %38 : vector<4x10xf32>
    %40 = vector.extract_strided_slice %22 {offsets = [2, 0, 0], sizes = [1, 4, 30], strides = [1, 1, 1]} : vector<8x4x30xf32> to vector<1x4x30xf32>
    %41 = vector.shape_cast %40 : vector<1x4x30xf32> to vector<4x30xf32>
    %cst_6 = arith.constant dense<0.000000e+00> : vector<4x30xf32>
    %42 = tpu.matmul %36, %1, %cst_6 {dimension_numbers = #tpu.dot_dimension_numbers<[1], [0], [0], [1], [0, 0, 1, 1], [], []>} : vector<4x10xf32>, vector<10x30xf32>, vector<4x30xf32> -> vector<4x30xf32>
    %43 = arith.addf %41, %42 : vector<4x30xf32>
    %44 = arith.negf %43 : vector<4x30xf32>
    %45 = math.exp %44 : vector<4x30xf32>
    %cst_7 = arith.constant 1.000000e+00 : f32
    %46 = vector.broadcast %cst_7 : f32 to vector<4x30xf32>
    %47 = arith.addf %46, %45 : vector<4x30xf32>
    %48 = arith.divf %46, %47 : vector<4x30xf32>
    %49 = vector.extract_strided_slice %48 {offsets = [0, 0], sizes = [4, 10], strides = [1, 1]} : vector<4x30xf32> to vector<4x10xf32>
    %50 = vector.extract_strided_slice %48 {offsets = [0, 10], sizes = [4, 10], strides = [1, 1]} : vector<4x30xf32> to vector<4x10xf32>
    %51 = vector.extract_strided_slice %48 {offsets = [0, 20], sizes = [4, 10], strides = [1, 1]} : vector<4x30xf32> to vector<4x10xf32>
    %52 = arith.mulf %50, %39 : vector<4x10xf32>
    %53 = arith.mulf %49, %51 : vector<4x10xf32>
    %54 = arith.addf %52, %53 : vector<4x10xf32>
    %55 = vector.extract_strided_slice %22 {offsets = [3, 0, 0], sizes = [1, 4, 30], strides = [1, 1, 1]} : vector<8x4x30xf32> to vector<1x4x30xf32>
    %56 = vector.shape_cast %55 : vector<1x4x30xf32> to vector<4x30xf32>
    %cst_8 = arith.constant dense<0.000000e+00> : vector<4x30xf32>
    %57 = tpu.matmul %51, %1, %cst_8 {dimension_numbers = #tpu.dot_dimension_numbers<[1], [0], [0], [1], [0, 0, 1, 1], [], []>} : vector<4x10xf32>, vector<10x30xf32>, vector<4x30xf32> -> vector<4x30xf32>
    %58 = arith.addf %56, %57 : vector<4x30xf32>
    %59 = arith.negf %58 : vector<4x30xf32>
    %60 = math.exp %59 : vector<4x30xf32>
    %cst_9 = arith.constant 1.000000e+00 : f32
    %61 = vector.broadcast %cst_9 : f32 to vector<4x30xf32>
    %62 = arith.addf %61, %60 : vector<4x30xf32>
    %63 = arith.divf %61, %62 : vector<4x30xf32>
    %64 = vector.extract_strided_slice %63 {offsets = [0, 0], sizes = [4, 10], strides = [1, 1]} : vector<4x30xf32> to vector<4x10xf32>
    %65 = vector.extract_strided_slice %63 {offsets = [0, 10], sizes = [4, 10], strides = [1, 1]} : vector<4x30xf32> to vector<4x10xf32>
    %66 = vector.extract_strided_slice %63 {offsets = [0, 20], sizes = [4, 10], strides = [1, 1]} : vector<4x30xf32> to vector<4x10xf32>
    %67 = arith.mulf %65, %54 : vector<4x10xf32>
    %68 = arith.mulf %64, %66 : vector<4x10xf32>
    %69 = arith.addf %67, %68 : vector<4x10xf32>
    %70 = vector.extract_strided_slice %22 {offsets = [4, 0, 0], sizes = [1, 4, 30], strides = [1, 1, 1]} : vector<8x4x30xf32> to vector<1x4x30xf32>
    %71 = vector.shape_cast %70 : vector<1x4x30xf32> to vector<4x30xf32>
    %cst_10 = arith.constant dense<0.000000e+00> : vector<4x30xf32>
    %72 = tpu.matmul %66, %1, %cst_10 {dimension_numbers = #tpu.dot_dimension_numbers<[1], [0], [0], [1], [0, 0, 1, 1], [], []>} : vector<4x10xf32>, vector<10x30xf32>, vector<4x30xf32> -> vector<4x30xf32>
    %73 = arith.addf %71, %72 : vector<4x30xf32>
    %74 = arith.negf %73 : vector<4x30xf32>
    %75 = math.exp %74 : vector<4x30xf32>
    %cst_11 = arith.constant 1.000000e+00 : f32
    %76 = vector.broadcast %cst_11 : f32 to vector<4x30xf32>
    %77 = arith.addf %76, %75 : vector<4x30xf32>
    %78 = arith.divf %76, %77 : vector<4x30xf32>
    %79 = vector.extract_strided_slice %78 {offsets = [0, 0], sizes = [4, 10], strides = [1, 1]} : vector<4x30xf32> to vector<4x10xf32>
    %80 = vector.extract_strided_slice %78 {offsets = [0, 10], sizes = [4, 10], strides = [1, 1]} : vector<4x30xf32> to vector<4x10xf32>
    %81 = vector.extract_strided_slice %78 {offsets = [0, 20], sizes = [4, 10], strides = [1, 1]} : vector<4x30xf32> to vector<4x10xf32>
    %82 = arith.mulf %80, %69 : vector<4x10xf32>
    %83 = arith.mulf %79, %81 : vector<4x10xf32>
    %84 = arith.addf %82, %83 : vector<4x10xf32>
    %85 = vector.extract_strided_slice %22 {offsets = [5, 0, 0], sizes = [1, 4, 30], strides = [1, 1, 1]} : vector<8x4x30xf32> to vector<1x4x30xf32>
    %86 = vector.shape_cast %85 : vector<1x4x30xf32> to vector<4x30xf32>
    %cst_12 = arith.constant dense<0.000000e+00> : vector<4x30xf32>
    %87 = tpu.matmul %81, %1, %cst_12 {dimension_numbers = #tpu.dot_dimension_numbers<[1], [0], [0], [1], [0, 0, 1, 1], [], []>} : vector<4x10xf32>, vector<10x30xf32>, vector<4x30xf32> -> vector<4x30xf32>
    %88 = arith.addf %86, %87 : vector<4x30xf32>
    %89 = arith.negf %88 : vector<4x30xf32>
    %90 = math.exp %89 : vector<4x30xf32>
    %cst_13 = arith.constant 1.000000e+00 : f32
    %91 = vector.broadcast %cst_13 : f32 to vector<4x30xf32>
    %92 = arith.addf %91, %90 : vector<4x30xf32>
    %93 = arith.divf %91, %92 : vector<4x30xf32>
    %94 = vector.extract_strided_slice %93 {offsets = [0, 0], sizes = [4, 10], strides = [1, 1]} : vector<4x30xf32> to vector<4x10xf32>
    %95 = vector.extract_strided_slice %93 {offsets = [0, 10], sizes = [4, 10], strides = [1, 1]} : vector<4x30xf32> to vector<4x10xf32>
    %96 = vector.extract_strided_slice %93 {offsets = [0, 20], sizes = [4, 10], strides = [1, 1]} : vector<4x30xf32> to vector<4x10xf32>
    %97 = arith.mulf %95, %84 : vector<4x10xf32>
    %98 = arith.mulf %94, %96 : vector<4x10xf32>
    %99 = arith.addf %97, %98 : vector<4x10xf32>
    %100 = vector.extract_strided_slice %22 {offsets = [6, 0, 0], sizes = [1, 4, 30], strides = [1, 1, 1]} : vector<8x4x30xf32> to vector<1x4x30xf32>
    %101 = vector.shape_cast %100 : vector<1x4x30xf32> to vector<4x30xf32>
    %cst_14 = arith.constant dense<0.000000e+00> : vector<4x30xf32>
    %102 = tpu.matmul %96, %1, %cst_14 {dimension_numbers = #tpu.dot_dimension_numbers<[1], [0], [0], [1], [0, 0, 1, 1], [], []>} : vector<4x10xf32>, vector<10x30xf32>, vector<4x30xf32> -> vector<4x30xf32>
    %103 = arith.addf %101, %102 : vector<4x30xf32>
    %104 = arith.negf %103 : vector<4x30xf32>
    %105 = math.exp %104 : vector<4x30xf32>
    %cst_15 = arith.constant 1.000000e+00 : f32
    %106 = vector.broadcast %cst_15 : f32 to vector<4x30xf32>
    %107 = arith.addf %106, %105 : vector<4x30xf32>
    %108 = arith.divf %106, %107 : vector<4x30xf32>
    %109 = vector.extract_strided_slice %108 {offsets = [0, 0], sizes = [4, 10], strides = [1, 1]} : vector<4x30xf32> to vector<4x10xf32>
    %110 = vector.extract_strided_slice %108 {offsets = [0, 10], sizes = [4, 10], strides = [1, 1]} : vector<4x30xf32> to vector<4x10xf32>
    %111 = vector.extract_strided_slice %108 {offsets = [0, 20], sizes = [4, 10], strides = [1, 1]} : vector<4x30xf32> to vector<4x10xf32>
    %112 = arith.mulf %110, %99 : vector<4x10xf32>
    %113 = arith.mulf %109, %111 : vector<4x10xf32>
    %114 = arith.addf %112, %113 : vector<4x10xf32>
    %115 = vector.extract_strided_slice %22 {offsets = [7, 0, 0], sizes = [1, 4, 30], strides = [1, 1, 1]} : vector<8x4x30xf32> to vector<1x4x30xf32>
    %116 = vector.shape_cast %115 : vector<1x4x30xf32> to vector<4x30xf32>
    %cst_16 = arith.constant dense<0.000000e+00> : vector<4x30xf32>
    %117 = tpu.matmul %111, %1, %cst_16 {dimension_numbers = #tpu.dot_dimension_numbers<[1], [0], [0], [1], [0, 0, 1, 1], [], []>} : vector<4x10xf32>, vector<10x30xf32>, vector<4x30xf32> -> vector<4x30xf32>
    %118 = arith.addf %116, %117 : vector<4x30xf32>
    %119 = arith.negf %118 : vector<4x30xf32>
    %120 = math.exp %119 : vector<4x30xf32>
    %cst_17 = arith.constant 1.000000e+00 : f32
    %121 = vector.broadcast %cst_17 : f32 to vector<4x30xf32>
    %122 = arith.addf %121, %120 : vector<4x30xf32>
    %123 = arith.divf %121, %122 : vector<4x30xf32>
    %124 = vector.extract_strided_slice %123 {offsets = [0, 0], sizes = [4, 10], strides = [1, 1]} : vector<4x30xf32> to vector<4x10xf32>
    %125 = vector.extract_strided_slice %123 {offsets = [0, 10], sizes = [4, 10], strides = [1, 1]} : vector<4x30xf32> to vector<4x10xf32>
    %126 = vector.extract_strided_slice %123 {offsets = [0, 20], sizes = [4, 10], strides = [1, 1]} : vector<4x30xf32> to vector<4x10xf32>
    %127 = arith.mulf %125, %114 : vector<4x10xf32>
    %128 = arith.mulf %124, %126 : vector<4x10xf32>
    %129 = arith.addf %127, %128 : vector<4x10xf32>
    %130 = vector.broadcast %5 : vector<1x10xf32> to vector<4x10xf32>
    %131 = arith.mulf %126, %130 : vector<4x10xf32>
    %cst_18 = arith.constant dense<0.000000e+00> : vector<4xf32>
    %132 = vector.multi_reduction <add>, %131, %cst_18 [1] : vector<4x10xf32> to vector<4xf32>
    %133 = vector.shape_cast %132 : vector<4xf32> to vector<4x1xf32>
    %134 = vector.broadcast %6 : vector<1x1xf32> to vector<4x1xf32>
    %135 = arith.addf %133, %134 : vector<4x1xf32>
    %136 = vector.broadcast %135 : vector<4x1xf32> to vector<4x10xf32>
    %137 = arith.addf %129, %136 : vector<4x10xf32>
    %c0_19 = arith.constant 0 : index
    %c0_20 = arith.constant 0 : index
    %138 = vector.load %arg3[%c0_19, %c0_20] : memref<4x10xf32, #tpu.memory_space<vmem>>, vector<4x10xf32>
    tpu.vector_store %arg3[%c0_19, %c0_20], %137 {strides = array<i32>} : memref<4x10xf32, #tpu.memory_space<vmem>>, vector<4x10xf32>,
    return
  }
  func.func @transform_0(%arg0: i32) -> (i32, i32) {
    %c0_i32 = arith.constant 0 : i32
    %c0_i32_0 = arith.constant 0 : i32
    return %arg0, %c0_i32 : i32, i32
  }
  func.func @transform_1(%arg0: i32) -> (i32, i32) {
    %c0_i32 = arith.constant 0 : i32
    %c0_i32_0 = arith.constant 0 : i32
    %c0_i32_1 = arith.constant 0 : i32
    return %c0_i32, %c0_i32_0 : i32, i32
  }
  func.func @transform_2(%arg0: i32) -> (i32, i32) {
    %c0_i32 = arith.constant 0 : i32
    %c0_i32_0 = arith.constant 0 : i32
    return %arg0, %c0_i32 : i32, i32
  }
}

</mosaic_0001>

<llo_original>
// kernel: count_lstm_forward.1
$region0: #{count_lstm_forward.1}
  #allocation0 [shape = 'u32[]', space=smem, size = 0x4, offset = 0x4, fixed_abs, tag = 'smem constant byte address 0x4 - core index']
  #allocation1 [shape = 'u32[72,128]{1,0:T(1,128)}', space=vmem, size = 0x9000, scoped, tag = 'internal scratch']
  %s0 = inlined_call_operand.vmem [shape: f32[4,8], index: 0, kind: input, shape index: {}]
  %s1 = inlined_call_operand.vmem [shape: f32[14,30], index: 1, kind: input, shape index: {}]
  %s2 = inlined_call_operand.hbm [shape: f32[4,10], index: 2, kind: output, shape index: {}]
  %s3 = sld [smem:[#allocation0]]
  $region18: #{count_lstm_forward.1} parent=0
    _
  %s5 = ssub.s32 1, %s3
  %s6 = scalar_select 0, %s5, %s3
  $region1: #{count_lstm_forward.1} parent=0
    #allocation2 [shape = 'u8[2048]{0}', space=vmem, size = 0x800, scoped, tag = 'output window, operand 0, single buffered']
    #allocation3 [shape = 's32[1]{0}', space=sflag, size = 0x4, scoped, tag = 'scoped memory for count_lstm_forward.1']
    %7 = vsyncpa [#allocation3], 0
    // Predicated region
    $region2: #{count_lstm_forward.1} parent=1 // pred_check
      _
    $region3: #{count_lstm_forward.1} parent=1 // pred_check_branch
      %9 = sbr.rel (0) target = $region5
    $region4: #{count_lstm_forward.1} parent=1 // pred_region
      _
    $region5: #{count_lstm_forward.1} parent=1 // pred_fallthru
      _
    // Predicated region
    $region6: #{count_lstm_forward.1} parent=1 // pred_check
      _
    $region7: #{count_lstm_forward.1} parent=1 // pred_check_branch
      %11 = sbr.rel (0) target = $region9
    $region8: #{count_lstm_forward.1} parent=1 // pred_region
      _
    $region9: #{count_lstm_forward.1} parent=1 // pred_fallthru
      _
    %v12 = vld [vmem:[%s1] sm:$0xff]
    %v13 = vld [vmem:[%s1 + $0x8] sm:$0x3f]
    %v14 = vld [vmem:[%s0] sm:$0xf]
    %16 = vset.pattern.permute.xlu0 0
    %17 = vperm.xlu0 %16, %v14
    %v18 = vpop.permute.xlu0 %17
    %v20 = vperm.slane %v13, 2
    %v21 = vmul.f32 %v18, %v20
    %v22 = vperm.slane %v13, 4
    %v23 = vadd.f32 %v21, %v22
    %24 = vxpose.xlu0.b32.start [1/16] %v14, 128
    %25 = vxpose.xlu0.b32.cont [2/16] 0.0, 128
    %26 = vxpose.xlu0.b32.cont [3/16] 0.0, 128
    %27 = vxpose.xlu0.b32.cont [4/16] 0.0, 128
    %28 = vxpose.xlu0.b32.cont [5/16] 0.0, 128
    %29 = vxpose.xlu0.b32.cont [6/16] 0.0, 128
    %30 = vxpose.xlu0.b32.cont [7/16] 0.0, 128
    %31 = vxpose.xlu0.b32.cont [8/16] 0.0, 128
    %32 = vxpose.xlu0.b32.cont [9/16] 0.0, 128
    %33 = vxpose.xlu0.b32.cont [10/16] 0.0, 128
    %34 = vxpose.xlu0.b32.cont [11/16] 0.0, 128
    %35 = vxpose.xlu0.b32.cont [12/16] 0.0, 128
    %36 = vxpose.xlu0.b32.cont [13/16] 0.0, 128
    %37 = vxpose.xlu0.b32.cont [14/16] 0.0, 128
    %38 = vxpose.xlu0.b32.cont [15/16] 0.0, 128
    %39 = vxpose.xlu0.b32.end [16/16] 0.0, 128
    %v40 = vpop.trf.xlu0
    %v41 = vpop.trf.xlu0
    %v42 = vpop.trf.xlu0
    %v43 = vpop.trf.xlu0
    %v44 = vpop.trf.xlu0
    %v45 = vpop.trf.xlu0
    %v46 = vpop.trf.xlu0
    %v47 = vpop.trf.xlu0
    %v48 = vpop.trf.xlu0
    %v49 = vpop.trf.xlu0
    %v50 = vpop.trf.xlu0
    %v51 = vpop.trf.xlu0
    %v52 = vpop.trf.xlu0
    %v53 = vpop.trf.xlu0
    %v54 = vpop.trf.xlu0
    %v55 = vpop.trf.xlu0
    %v56 = vperm.slane %v40, 1
    %v57 = vlaneseq
    %v58 = vshrl.u32 %v57, 7
    %60 = vset.pattern.permute.xlu0 %v58
    %61 = vperm.xlu0 %60, %v56
    %v62 = vpop.permute.xlu0 %61
    %v63 = vperm.slane %v40, 2
    %v64 = vlaneseq
    %v65 = vshrl.u32 %v64, 7
    %67 = vset.pattern.permute.xlu0 %v65
    %68 = vperm.xlu0 %67, %v63
    %v69 = vpop.permute.xlu0 %68
    %v70 = vperm.slane %v40, 3
    %v71 = vlaneseq
    %v72 = vshrl.u32 %v71, 7
    %74 = vset.pattern.permute.xlu0 %v72
    %75 = vperm.xlu0 %74, %v70
    %v76 = vpop.permute.xlu0 %75
    %v77 = vperm.slane %v40, 4
    %v78 = vlaneseq
    %v79 = vshrl.u32 %v78, 7
    %81 = vset.pattern.permute.xlu0 %v79
    %82 = vperm.xlu0 %81, %v77
    %v83 = vpop.permute.xlu0 %82
    %v84 = vperm.slane %v40, 5
    %v85 = vlaneseq
    %v86 = vshrl.u32 %v85, 7
    %88 = vset.pattern.permute.xlu0 %v86
    %89 = vperm.xlu0 %88, %v84
    %v90 = vpop.permute.xlu0 %89
    %v91 = vperm.slane %v40, 6
    %v92 = vlaneseq
    %v93 = vshrl.u32 %v92, 7
    %95 = vset.pattern.permute.xlu0 %v93
    %96 = vperm.xlu0 %95, %v91
    %v97 = vpop.permute.xlu0 %96
    %v98 = vperm.slane %v40, 7
    %v99 = vlaneseq
    %v100 = vshrl.u32 %v99, 7
    %102 = vset.pattern.permute.xlu0 %v100
    %103 = vperm.xlu0 %102, %v98
    %v104 = vpop.permute.xlu0 %103
    %v105 = vperm.slane %v13, 3
    %v106 = vmul.f32 %v62, %v105
    %v107 = vmul.f32 %v69, %v105
    %v108 = vmul.f32 %v76, %v105
    %v109 = vmul.f32 %v83, %v105
    %v110 = vmul.f32 %v90, %v105
    %v111 = vmul.f32 %v97, %v105
    %v112 = vmul.f32 %v104, %v105
    %v113 = vadd.f32 %v23, %v106
    %v114 = vadd.f32 %v23, %v107
    %v115 = vadd.f32 %v23, %v108
    %v116 = vadd.f32 %v23, %v109
    %v117 = vadd.f32 %v23, %v110
    %v118 = vadd.f32 %v23, %v111
    %v119 = vadd.f32 %v23, %v112
    %vm120 = vcmask 80896
    %v122 = vsel %vm120, 0.0, 0
    %vm124 = vcmask 1041408
    %v126 = vsel %vm124, %v13, 0
    %128 = vmatpush.msra.mxu0 0.0
    %129 = vmatpush.msra.mxu0 0.0
    %130 = vmatpush.msra.mxu0 0.0
    %131 = vmatpush.msra.mxu0 0.0
    %132 = vmatpush.msra.mxu0 0.0
    %133 = vmatpush.msra.mxu0 0.0
    %134 = vmatpush.msra.mxu0 0.0
    %135 = vmatpush.msra.mxu0 0.0
    %136 = vmatpush.msra.mxu0 0.0
    %137 = vmatpush.msra.mxu0 0.0
    %138 = vmatpush.msra.mxu0 0.0
    %139 = vmatpush.msra.mxu0 0.0
    %140 = vmatpush.msra.mxu0 0.0
    %141 = vmatpush.msra.mxu0 0.0
    %142 = vmatpush.msra.mxu0 %v126
    %143 = vmatpush.msra.mxu0 %v12
    %144 = vmatmul.f32.gmra.mxu0 %v122
    %v145 = vpop.f32.mrf.mxu0
    %v146 = vadd.f32 0.0, %v145
    %147 = vdwg.mxu0
    %v148 = vadd.f32 %v113, %v146
    %v149 = vxor.u32 %v148, 2147483648
    %v150 = vmul.f32 %v149, 1.442695
    %v151 = vpow.pop %v150
    %v152 = vadd.f32 %v151, 1.0
    %v153 = vrcp.pop %v152
    %v154 = vmul.f32 %v152, %v153
    %v155 = vsub.f32 1.0, %v154
    %v156 = vmul.f32 %v153, %v155
    %v157 = vadd.f32 %v153, %v156
    %vm158 = vweird.f32 %v152
    %vm159 = vweird.f32 %v153
    %vm160 = vmor %vm158, %vm159
    %v161 = vsel %vm160, %v153, %v157
    %v162 = vand.u32 2147483647, %v152
    %vm163 = vcmp.eq.f32.partialorder %v162, 8.507059e+37
    %v164 = vand.u32 %v152, 2147483648
    %v165 = vor.u32 1.1754944e-38, %v164
    %v166 = vsel %vm163, %v165, %v161
    %v167 = vmul.f32 1.0, %v166
    %v168 = vmul.f32 %v167, 0.0
    %170 = vrot.lane.b32.xlu0 %v167, 108
    %v171 = vpop.permute.xlu0 %170
    %v173 = vmul.f32 %v167, %v171
    %175 = vrot.lane.b32.xlu0 %v173, 10
    %v176 = vpop.permute.xlu0 %175
    %v178 = vadd.f32 %v168, %v176
    %v179 = vsel %vm120, %v171, 0
    %181 = vmatpush.msra.mxu0 0.0
    %182 = vmatpush.msra.mxu0 0.0
    %183 = vmatpush.msra.mxu0 0.0
    %184 = vmatpush.msra.mxu0 0.0
    %185 = vmatpush.msra.mxu0 0.0
    %186 = vmatpush.msra.mxu0 0.0
    %187 = vmatpush.msra.mxu0 0.0
    %188 = vmatpush.msra.mxu0 0.0
    %189 = vmatpush.msra.mxu0 0.0
    %190 = vmatpush.msra.mxu0 0.0
    %191 = vmatpush.msra.mxu0 0.0
    %192 = vmatpush.msra.mxu0 0.0
    %193 = vmatpush.msra.mxu0 0.0
    %194 = vmatpush.msra.mxu0 0.0
    %195 = vmatpush.msra.mxu0 %v126
    %196 = vmatpush.msra.mxu0 %v12
    %197 = vmatmul.f32.gmra.mxu0 %v179
    %v198 = vpop.f32.mrf.mxu0
    %v199 = vadd.f32 0.0, %v198
    %200 = vdwg.mxu0
    %v201 = vadd.f32 %v114, %v199
    %v202 = vxor.u32 %v201, 2147483648
    %v203 = vmul.f32 %v202, 1.442695
    %v204 = vpow.pop %v203
    %v205 = vadd.f32 %v204, 1.0
    %v206 = vrcp.pop %v205
    %v207 = vmul.f32 %v205, %v206
    %v208 = vsub.f32 1.0, %v207
    %v209 = vmul.f32 %v206, %v208
    %v210 = vadd.f32 %v206, %v209
    %vm211 = vweird.f32 %v205
    %vm212 = vweird.f32 %v206
    %vm213 = vmor %vm211, %vm212
    %v214 = vsel %vm213, %v206, %v210
    %v215 = vand.u32 2147483647, %v205
    %vm216 = vcmp.eq.f32.partialorder %v215, 8.507059e+37
    %v217 = vand.u32 %v205, 2147483648
    %v218 = vor.u32 1.1754944e-38, %v217
    %v219 = vsel %vm216, %v218, %v214
    %v220 = vmul.f32 1.0, %v219
    %v221 = vmul.f32 %v220, %v178
    %223 = vrot.lane.b32.xlu0 %v220, 108
    %v224 = vpop.permute.xlu0 %223
    %v226 = vmul.f32 %v220, %v224
    %228 = vrot.lane.b32.xlu0 %v226, 10
    %v229 = vpop.permute.xlu0 %228
    %v231 = vadd.f32 %v221, %v229
    %v232 = vsel %vm120, %v224, 0
    %234 = vmatpush.msra.mxu0 0.0
    %235 = vmatpush.msra.mxu0 0.0
    %236 = vmatpush.msra.mxu0 0.0
    %237 = vmatpush.msra.mxu0 0.0
    %238 = vmatpush.msra.mxu0 0.0
    %239 = vmatpush.msra.mxu0 0.0
    %240 = vmatpush.msra.mxu0 0.0
    %241 = vmatpush.msra.mxu0 0.0
    %242 = vmatpush.msra.mxu0 0.0
    %243 = vmatpush.msra.mxu0 0.0
    %244 = vmatpush.msra.mxu0 0.0
    %245 = vmatpush.msra.mxu0 0.0
    %246 = vmatpush.msra.mxu0 0.0
    %247 = vmatpush.msra.mxu0 0.0
    %248 = vmatpush.msra.mxu0 %v126
    %249 = vmatpush.msra.mxu0 %v12
    %250 = vmatmul.f32.gmra.mxu0 %v232
    %v251 = vpop.f32.mrf.mxu0
    %v252 = vadd.f32 0.0, %v251
    %253 = vdwg.mxu0
    %v254 = vadd.f32 %v115, %v252
    %v255 = vxor.u32 %v254, 2147483648
    %v256 = vmul.f32 %v255, 1.442695
    %v257 = vpow.pop %v256
    %v258 = vadd.f32 %v257, 1.0
    %v259 = vrcp.pop %v258
    %v260 = vmul.f32 %v258, %v259
    %v261 = vsub.f32 1.0, %v260
    %v262 = vmul.f32 %v259, %v261
    %v263 = vadd.f32 %v259, %v262
    %vm264 = vweird.f32 %v258
    %vm265 = vweird.f32 %v259
    %vm266 = vmor %vm264, %vm265
    %v267 = vsel %vm266, %v259, %v263
    %v268 = vand.u32 2147483647, %v258
    %vm269 = vcmp.eq.f32.partialorder %v268, 8.507059e+37
    %v270 = vand.u32 %v258, 2147483648
    %v271 = vor.u32 1.1754944e-38, %v270
    %v272 = vsel %vm269, %v271, %v267
    %v273 = vmul.f32 1.0, %v272
    %v274 = vmul.f32 %v273, %v231
    %276 = vrot.lane.b32.xlu0 %v273, 108
    %v277 = vpop.permute.xlu0 %276
    %v279 = vmul.f32 %v273, %v277
    %281 = vrot.lane.b32.xlu0 %v279, 10
    %v282 = vpop.permute.xlu0 %281
    %v284 = vadd.f32 %v274, %v282
    %v285 = vsel %vm120, %v277, 0
    %287 = vmatpush.msra.mxu0 0.0
    %288 = vmatpush.msra.mxu0 0.0
    %289 = vmatpush.msra.mxu0 0.0
    %290 = vmatpush.msra.mxu0 0.0
    %291 = vmatpush.msra.mxu0 0.0
    %292 = vmatpush.msra.mxu0 0.0
    %293 = vmatpush.msra.mxu0 0.0
    %294 = vmatpush.msra.mxu0 0.0
    %295 = vmatpush.msra.mxu0 0.0
    %296 = vmatpush.msra.mxu0 0.0
    %297 = vmatpush.msra.mxu0 0.0
    %298 = vmatpush.msra.mxu0 0.0
    %299 = vmatpush.msra.mxu0 0.0
    %300 = vmatpush.msra.mxu0 0.0
    %301 = vmatpush.msra.mxu0 %v126
    %302 = vmatpush.msra.mxu0 %v12
    %303 = vmatmul.f32.gmra.mxu0 %v285
    %v304 = vpop.f32.mrf.mxu0
    %v305 = vadd.f32 0.0, %v304
    %306 = vdwg.mxu0
    %v307 = vadd.f32 %v116, %v305
    %v308 = vxor.u32 %v307, 2147483648
    %v309 = vmul.f32 %v308, 1.442695
    %v310 = vpow.pop %v309
    %v311 = vadd.f32 %v310, 1.0
    %v312 = vrcp.pop %v311
    %v313 = vmul.f32 %v311, %v312
    %v314 = vsub.f32 1.0, %v313
    %v315 = vmul.f32 %v312, %v314
    %v316 = vadd.f32 %v312, %v315
    %vm317 = vweird.f32 %v311
    %vm318 = vweird.f32 %v312
    %vm319 = vmor %vm317, %vm318
    %v320 = vsel %vm319, %v312, %v316
    %v321 = vand.u32 2147483647, %v311
    %vm322 = vcmp.eq.f32.partialorder %v321, 8.507059e+37
    %v323 = vand.u32 %v311, 2147483648
    %v324 = vor.u32 1.1754944e-38, %v323
    %v325 = vsel %vm322, %v324, %v320
    %v326 = vmul.f32 1.0, %v325
    %v327 = vmul.f32 %v326, %v284
    %329 = vrot.lane.b32.xlu0 %v326, 108
    %v330 = vpop.permute.xlu0 %329
    %v332 = vmul.f32 %v326, %v330
    %334 = vrot.lane.b32.xlu0 %v332, 10
    %v335 = vpop.permute.xlu0 %334
    %v337 = vadd.f32 %v327, %v335
    %v338 = vsel %vm120, %v330, 0
    %340 = vmatpush.msra.mxu0 0.0
    %341 = vmatpush.msra.mxu0 0.0
    %342 = vmatpush.msra.mxu0 0.0
    %343 = vmatpush.msra.mxu0 0.0
    %344 = vmatpush.msra.mxu0 0.0
    %345 = vmatpush.msra.mxu0 0.0
    %346 = vmatpush.msra.mxu0 0.0
    %347 = vmatpush.msra.mxu0 0.0
    %348 = vmatpush.msra.mxu0 0.0
    %349 = vmatpush.msra.mxu0 0.0
    %350 = vmatpush.msra.mxu0 0.0
    %351 = vmatpush.msra.mxu0 0.0
    %352 = vmatpush.msra.mxu0 0.0
    %353 = vmatpush.msra.mxu0 0.0
    %354 = vmatpush.msra.mxu0 %v126
    %355 = vmatpush.msra.mxu0 %v12
    %356 = vmatmul.f32.gmra.mxu0 %v338
    %v357 = vpop.f32.mrf.mxu0
    %v358 = vadd.f32 0.0, %v357
    %359 = vdwg.mxu0
    %v360 = vadd.f32 %v117, %v358
    %v361 = vxor.u32 %v360, 2147483648
    %v362 = vmul.f32 %v361, 1.442695
    %v363 = vpow.pop %v362
    %v364 = vadd.f32 %v363, 1.0
    %v365 = vrcp.pop %v364
    %v366 = vmul.f32 %v364, %v365
    %v367 = vsub.f32 1.0, %v366
    %v368 = vmul.f32 %v365, %v367
    %v369 = vadd.f32 %v365, %v368
    %vm370 = vweird.f32 %v364
    %vm371 = vweird.f32 %v365
    %vm372 = vmor %vm370, %vm371
    %v373 = vsel %vm372, %v365, %v369
    %v374 = vand.u32 2147483647, %v364
    %vm375 = vcmp.eq.f32.partialorder %v374, 8.507059e+37
    %v376 = vand.u32 %v364, 2147483648
    %v377 = vor.u32 1.1754944e-38, %v376
    %v378 = vsel %vm375, %v377, %v373
    %v379 = vmul.f32 1.0, %v378
    %v380 = vmul.f32 %v379, %v337
    %382 = vrot.lane.b32.xlu0 %v379, 108
    %v383 = vpop.permute.xlu0 %382
    %v385 = vmul.f32 %v379, %v383
    %387 = vrot.lane.b32.xlu0 %v385, 10
    %v388 = vpop.permute.xlu0 %387
    %v390 = vadd.f32 %v380, %v388
    %v391 = vsel %vm120, %v383, 0
    %393 = vmatpush.msra.mxu0 0.0
    %394 = vmatpush.msra.mxu0 0.0
    %395 = vmatpush.msra.mxu0 0.0
    %396 = vmatpush.msra.mxu0 0.0
    %397 = vmatpush.msra.mxu0 0.0
    %398 = vmatpush.msra.mxu0 0.0
    %399 = vmatpush.msra.mxu0 0.0
    %400 = vmatpush.msra.mxu0 0.0
    %401 = vmatpush.msra.mxu0 0.0
    %402 = vmatpush.msra.mxu0 0.0
    %403 = vmatpush.msra.mxu0 0.0
    %404 = vmatpush.msra.mxu0 0.0
    %405 = vmatpush.msra.mxu0 0.0
    %406 = vmatpush.msra.mxu0 0.0
    %407 = vmatpush.msra.mxu0 %v126
    %408 = vmatpush.msra.mxu0 %v12
    %409 = vmatmul.f32.gmra.mxu0 %v391
    %v410 = vpop.f32.mrf.mxu0
    %v411 = vadd.f32 0.0, %v410
    %412 = vdwg.mxu0
    %v413 = vadd.f32 %v118, %v411
    %v414 = vxor.u32 %v413, 2147483648
    %v415 = vmul.f32 %v414, 1.442695
    %v416 = vpow.pop %v415
    %v417 = vadd.f32 %v416, 1.0
    %v418 = vrcp.pop %v417
    %v419 = vmul.f32 %v417, %v418
    %v420 = vsub.f32 1.0, %v419
    %v421 = vmul.f32 %v418, %v420
    %v422 = vadd.f32 %v418, %v421
    %vm423 = vweird.f32 %v417
    %vm424 = vweird.f32 %v418
    %vm425 = vmor %vm423, %vm424
    %v426 = vsel %vm425, %v418, %v422
    %v427 = vand.u32 2147483647, %v417
    %vm428 = vcmp.eq.f32.partialorder %v427, 8.507059e+37
    %v429 = vand.u32 %v417, 2147483648
    %v430 = vor.u32 1.1754944e-38, %v429
    %v431 = vsel %vm428, %v430, %v426
    %v432 = vmul.f32 1.0, %v431
    %v433 = vmul.f32 %v432, %v390
    %435 = vrot.lane.b32.xlu0 %v432, 108
    %v436 = vpop.permute.xlu0 %435
    %v438 = vmul.f32 %v432, %v436
    %440 = vrot.lane.b32.xlu0 %v438, 10
    %v441 = vpop.permute.xlu0 %440
    %v443 = vadd.f32 %v433, %v441
    %v444 = vsel %vm120, %v436, 0
    %446 = vmatpush.msra.mxu0 0.0
    %447 = vmatpush.msra.mxu0 0.0
    %448 = vmatpush.msra.mxu0 0.0
    %449 = vmatpush.msra.mxu0 0.0
    %450 = vmatpush.msra.mxu0 0.0
    %451 = vmatpush.msra.mxu0 0.0
    %452 = vmatpush.msra.mxu0 0.0
    %453 = vmatpush.msra.mxu0 0.0
    %454 = vmatpush.msra.mxu0 0.0
    %455 = vmatpush.msra.mxu0 0.0
    %456 = vmatpush.msra.mxu0 0.0
    %457 = vmatpush.msra.mxu0 0.0
    %458 = vmatpush.msra.mxu0 0.0
    %459 = vmatpush.msra.mxu0 0.0
    %460 = vmatpush.msra.mxu0 %v126
    %461 = vmatpush.msra.mxu0 %v12
    %462 = vmatmul.f32.gmra.mxu0 %v444
    %v463 = vpop.f32.mrf.mxu0
    %v464 = vadd.f32 0.0, %v463
    %465 = vdwg.mxu0
    %v466 = vadd.f32 %v119, %v464
    %v467 = vxor.u32 %v466, 2147483648
    %v468 = vmul.f32 %v467, 1.442695
    %v469 = vpow.pop %v468
    %v470 = vadd.f32 %v469, 1.0
    %v471 = vrcp.pop %v470
    %v472 = vmul.f32 %v470, %v471
    %v473 = vsub.f32 1.0, %v472
    %v474 = vmul.f32 %v471, %v473
    %v475 = vadd.f32 %v471, %v474
    %vm476 = vweird.f32 %v470
    %vm477 = vweird.f32 %v471
    %vm478 = vmor %vm476, %vm477
    %v479 = vsel %vm478, %v471, %v475
    %v480 = vand.u32 2147483647, %v470
    %vm481 = vcmp.eq.f32.partialorder %v480, 8.507059e+37
    %v482 = vand.u32 %v470, 2147483648
    %v483 = vor.u32 1.1754944e-38, %v482
    %v484 = vsel %vm481, %v483, %v479
    %v485 = vmul.f32 1.0, %v484
    %v486 = vmul.f32 %v485, %v443
    %488 = vrot.lane.b32.xlu0 %v485, 108
    %v489 = vpop.permute.xlu0 %488
    %v491 = vmul.f32 %v485, %v489
    %493 = vrot.lane.b32.xlu0 %v491, 10
    %v494 = vpop.permute.xlu0 %493
    %v496 = vadd.f32 %v486, %v494
    %v497 = vperm.slane %v13, 5
    %499 = vrot.lane.b32.xlu0 %v497, 20
    %v500 = vpop.permute.xlu0 %499
    %v502 = vmul.f32 %v485, %v500
    %504 = vrot.lane.b32.xlu0 %v502, 108
    %v505 = vpop.permute.xlu0 %504
    %vm507 = vcmask 76800
    %v508 = vsel %vm507, %v505, 0.0
    %509 = vadd.xlane.f32.xlu0 %v508
    %v510 = vpop.xlane.xlu0 %509
    %v511 = vadd.f32 %v510, %v497
    %513 = vset.pattern.permute.xlu0 10
    %514 = vperm.xlu0 %513, %v511
    %v515 = vpop.permute.xlu0 %514
    %v517 = vadd.f32 %v496, %v515
    %519 = vrot.lane.b32.xlu0 %v517, 118
    %v520 = vpop.permute.xlu0 %519
    %522 = vst.msk [vmem:[#allocation2] sm:$0xf] %vm507, %v520
    // Predicated region
    $region10: #{count_lstm_forward.1} parent=1 // pred_check
      _
    $region11: #{count_lstm_forward.1} parent=1 // pred_check_branch
      %524 = sbr.rel (0) target = $region13
    $region12: #{count_lstm_forward.1} parent=1 // pred_region
      %526 = vsyncadd [#allocation3], 0
      %s528 = sshll.u32 [#allocation2], 4
      %s529 = int_to_ptr.vmem [resolvable:$true] %s528
      %s530 = sshll.u32 %s2, 4
      %s531 = int_to_ptr.hbm [resolvable:$true] %s530
      %533 = dma.vmem_to_hbm [thread:$0]  %s529, 64, %s531, [#allocation3]
    $region13: #{count_lstm_forward.1} parent=1 // pred_fallthru
      _
    // Predicated region
    $region14: #{count_lstm_forward.1} parent=1 // pred_check
      _
    $region15: #{count_lstm_forward.1} parent=1 // pred_check_branch
      %535 = sbr.rel (0) target = $region17
    $region16: #{count_lstm_forward.1} parent=1 // pred_region
      %537 = dma.done [#allocation3], 64
    $region17: #{count_lstm_forward.1} parent=1 // pred_fallthru
      _
    %538 = vsyncpa [#allocation3], 1

</llo_original>
